<compile_context>
chip_gen: v7x
topology: tpu7x:2x2x1
jax: 0.10.0
libtpu: 0.0.40
codegen_flags: <defaults>
</compile_context>

<pallas_src>
import jax
import jax.numpy as jnp
import numpy as np
from jax.experimental import pallas as pl
from jax.experimental.pallas import tpu as pltpu


def _round_up(x, m):
    return (x + m - 1) // m * m


def _cdiv(a, b):
    return (a + b - 1) // b


def _glu_kernel(x_ref, w1_ref, w2_ref, b1_ref, b2_ref, o_ref):
    # x_ref: (TM, Dp) bf16   w*_ref: (Dp, Dp) bf16   b*_ref: (1, Dp) f32
    # o_ref: (TM, Dp) caller dtype
    x = x_ref[...]
    # Gate dot first; sigmoid consumes its f32 result immediately, so the peak
    # live f32 intermediate stays ~TMxDp instead of TMx2Dp (less spill traffic,
    # which matters most on v5e's single vector-store slot).
    gate = jnp.dot(x, w2_ref[...], preferred_element_type=jnp.float32) + b2_ref[...]
    g = jax.nn.sigmoid(gate)
    val = jnp.dot(x, w1_ref[...], preferred_element_type=jnp.float32) + b1_ref[...]
    o_ref[...] = (val * g).astype(o_ref.dtype)


def glu_forward(x, w1, b1, w2, b2, *, tile_rows=512,
                vmem_budget_bytes=40 * 1024 * 1024):
    """Pallas GLU forward matching the PyTorch module.

    x  : (B, T, D) or (N, C, H, W) (force_1d -> (N, H, C*W), D = C*W)
    w1, w2 : PyTorch Conv1d weights (D, D, 1) (out, in, k) or (D, D)
    b1, b2 : (D,)
    Returns (B, T, D) in x.dtype, same as the PyTorch module.
    """
    if x.ndim == 4:
        n, c, h, w = x.shape
        x = jnp.transpose(x, (0, 2, 1, 3)).reshape(n, h, c * w)  # force_1d
    assert x.ndim == 3
    bsz, seq, d = x.shape

    if w1.ndim == 3:
        # TODO(synk): kernel_size > 1 ('same'-padded temporal conv) is not fused.
        assert w1.shape[-1] == 1 and w2.shape[-1] == 1, "only kernel_size=1 supported"
        w1 = w1[:, :, 0]
        w2 = w2[:, :, 0]
    assert w1.shape == (d, d) and w2.shape == (d, d)

    out_dtype = x.dtype
    mxu_dtype = jnp.bfloat16           # MXU input dtype; accumulation stays f32
    m = bsz * seq
    dp = _round_up(d, 128)             # lane-dense channel width

    # (out, in) -> (in, out), zero-pad channels to Dp, bf16 for the MXU.
    def _prep_w(wt):
        wt = wt.T.astype(mxu_dtype)
        if dp != d:
            wt = jnp.pad(wt, ((0, dp - d), (0, dp - d)))
        return wt

    # Bias stays f32: it is added to the f32 accumulator on the VPU.
    def _prep_b(bv):
        bv = bv.astype(jnp.float32)
        if dp != d:
            bv = jnp.pad(bv, (0, dp - d))
        return bv[None, :]

    w1p, w2p = _prep_w(w1), _prep_w(w2)             # (Dp, Dp) bf16 each
    b1p, b2p = _prep_b(b1), _prep_b(b2)             # (1, Dp)  f32 each

    x2 = x.reshape(m, d).astype(mxu_dtype)
    if dp != d:
        x2 = jnp.pad(x2, ((0, 0), (0, dp - d)))     # zero channel pad only

    # --- Row tile from an explicit VMEM budget (v7x has only 64 MiB). -------
    x_isz, o_isz = 2, jnp.dtype(out_dtype).itemsize
    w_bytes = 2 * dp * dp * x_isz + 2 * dp * 4      # Buffered(1) weights + f32 biases
    # per-row bytes: double-buffered x + double-buffered out + ~2 live f32 tiles
    per_row = dp * (2 * x_isz + 2 * o_isz + 2 * 4)
    avail = max(vmem_budget_bytes - w_bytes, 1 << 20)
    tm_cap = max(16, (avail // per_row) // 16 * 16)
    # Keep >= 2 grid steps whenever there is enough work so v7x can shard the
    # "parallel" axis across its 2 TensorCores (no-op on v5e/v6e).
    tm_two = _round_up(_cdiv(m, 2), 16) if m > 16 else 16
    tm = max(16, min(_round_up(tile_rows, 16), tm_cap, tm_two))
    grid_m = _cdiv(m, tm)                           # ragged last block is masked

    footprint = (2 * tm * dp * x_isz + 2 * tm * dp * o_isz
                 + w_bytes + 2 * tm * dp * 4)
    vmem_limit = int(min(48 * 1024 * 1024, max(2 * footprint, 32 * 1024 * 1024)))
    # TODO(synk): for very large D (bf16 weights alone approaching the budget),
    # add a second grid axis over the output-column dimension instead of
    # keeping both weight matrices fully resident.

    out = pl.pallas_call(
        _glu_kernel,
        out_shape=jax.ShapeDtypeStruct((m, dp), out_dtype),
        grid_spec=pltpu.PrefetchScalarGridSpec(
            num_scalar_prefetch=0,
            grid=(grid_m,),
            in_specs=[
                pl.BlockSpec((tm, dp), lambda i: (i, 0)),      # activations (tiled)
                pl.BlockSpec((dp, dp), lambda i: (0, 0),       # W1: resident, 1 buffer
                             pipeline_mode=pl.Buffered(1)),
                pl.BlockSpec((dp, dp), lambda i: (0, 0),       # W2: resident, 1 buffer
                             pipeline_mode=pl.Buffered(1)),
                pl.BlockSpec((1, dp), lambda i: (0, 0),        # b1 (f32): resident
                             pipeline_mode=pl.Buffered(1)),
                pl.BlockSpec((1, dp), lambda i: (0, 0),        # b2 (f32): resident
                             pipeline_mode=pl.Buffered(1)),
            ],
            out_specs=pl.BlockSpec((tm, dp), lambda i: (i, 0)),
        ),
        compiler_params=pltpu.CompilerParams(
            dimension_semantics=("parallel",),
            vmem_limit_bytes=vmem_limit,
        ),
    )(x2, w1p, w2p, b1p, b2p)

    if dp != d:
        out = out[:, :d]
    return out.reshape(bsz, seq, d)


if __name__ == "__main__":
    key = jax.random.PRNGKey(0)
    k1, k2, k3, k4, k5 = jax.random.split(key, 5)

    # 4D input as in DARTS usage: (N, C, H, W) -> force_1d -> (N, H, C*W).
    n, c, h, w = 2, 8, 16, 16
    d_model = c * w  # 128

    x = jax.random.normal(k1, (n, c, h, w), dtype=jnp.float32)
    w1 = jax.random.normal(k2, (d_model, d_model, 1), dtype=jnp.float32) * 0.05
    b1 = jax.random.normal(k3, (d_model,), dtype=jnp.float32) * 0.05
    w2 = jax.random.normal(k4, (d_model, d_model, 1), dtype=jnp.float32) * 0.05
    b2 = jax.random.normal(k5, (d_model,), dtype=jnp.float32) * 0.05

    out = jax.block_until_ready(glu_forward(x, w1, b1, w2, b2))

    # Pure-JAX reference mirroring the PyTorch module exactly (f32 end to end).
    xr = jnp.transpose(x, (0, 2, 1, 3)).reshape(n, h, c * w)  # force_1d
    a = jnp.einsum("btd,od->bto", xr, w1[:, :, 0]) + b1
    g = jnp.einsum("btd,od->bto", xr, w2[:, :, 0]) + b2
    ref = a * jax.nn.sigmoid(g)

    # Loose tolerance covers bf16 MXU inputs (f32 accumulation) vs f32 reference.
    np.testing.assert_allclose(np.asarray(out), np.asarray(ref), rtol=2e-2, atol=2e-2)
    print("KERNEL_OK")
</pallas_src>

<mosaic_0001>
module attributes {stable_mosaic.version = 11 : i64} {
  func.func @_glu_kernel(%arg0: i32, %arg1: memref<16x128xbf16, #tpu.memory_space<vmem>>, %arg2: memref<128x128xbf16, #tpu.memory_space<vmem>>, %arg3: memref<128x128xbf16, #tpu.memory_space<vmem>>, %arg4: memref<1x128xf32, #tpu.memory_space<vmem>>, %arg5: memref<1x128xf32, #tpu.memory_space<vmem>>, %arg6: memref<16x128xf32, #tpu.memory_space<vmem>>) attributes {dimension_semantics = [#tpu.dimension_semantics<parallel>], iteration_bounds = array<i64: 2>, scalar_prefetch = 0 : i64, scratch_operands = 0 : i64, tpu.core_type = #tpu.core_type<tc>, window_params = [{transform_indices = @transform_0, window_bounds = array<i64: 16, 128>}, {pipeline_mode = #tpu.pipeline_mode<synchronous>, transform_indices = @transform_1, window_bounds = array<i64: 128, 128>}, {pipeline_mode = #tpu.pipeline_mode<synchronous>, transform_indices = @transform_2, window_bounds = array<i64: 128, 128>}, {pipeline_mode = #tpu.pipeline_mode<synchronous>, transform_indices = @transform_3, window_bounds = array<i64: 1, 128>}, {pipeline_mode = #tpu.pipeline_mode<synchronous>, transform_indices = @transform_4, window_bounds = array<i64: 1, 128>}, {transform_indices = @transform_5, window_bounds = array<i64: 16, 128>}]} {
    %c0 = arith.constant 0 : index
    %c0_0 = arith.constant 0 : index
    %0 = vector.load %arg1[%c0, %c0_0] : memref<16x128xbf16, #tpu.memory_space<vmem>>, vector<16x128xbf16>
    %c0_1 = arith.constant 0 : index
    %c0_2 = arith.constant 0 : index
    %1 = vector.load %arg3[%c0_1, %c0_2] : memref<128x128xbf16, #tpu.memory_space<vmem>>, vector<128x128xbf16>
    %cst = arith.constant dense<0.000000e+00> : vector<16x128xf32>
    %2 = tpu.matmul %0, %1, %cst {dimension_numbers = #tpu.dot_dimension_numbers<[1], [0], [0], [1], [0, 0, 1, 1], [], []>} : vector<16x128xbf16>, vector<128x128xbf16>, vector<16x128xf32> -> vector<16x128xf32>
    %c0_3 = arith.constant 0 : index
    %c0_4 = arith.constant 0 : index
    %3 = vector.load %arg5[%c0_3, %c0_4] : memref<1x128xf32, #tpu.memory_space<vmem>>, vector<1x128xf32>
    %4 = vector.broadcast %3 : vector<1x128xf32> to vector<16x128xf32>
    %5 = arith.addf %2, %4 : vector<16x128xf32>
    %6 = arith.negf %5 : vector<16x128xf32>
    %7 = math.exp %6 : vector<16x128xf32>
    %cst_5 = arith.constant 1.000000e+00 : f32
    %8 = vector.broadcast %cst_5 : f32 to vector<16x128xf32>
    %9 = arith.addf %8, %7 : vector<16x128xf32>
    %10 = arith.divf %8, %9 : vector<16x128xf32>
    %c0_6 = arith.constant 0 : index
    %c0_7 = arith.constant 0 : index
    %11 = vector.load %arg2[%c0_6, %c0_7] : memref<128x128xbf16, #tpu.memory_space<vmem>>, vector<128x128xbf16>
    %cst_8 = arith.constant dense<0.000000e+00> : vector<16x128xf32>
    %12 = tpu.matmul %0, %11, %cst_8 {dimension_numbers = #tpu.dot_dimension_numbers<[1], [0], [0], [1], [0, 0, 1, 1], [], []>} : vector<16x128xbf16>, vector<128x128xbf16>, vector<16x128xf32> -> vector<16x128xf32>
    %c0_9 = arith.constant 0 : index
    %c0_10 = arith.constant 0 : index
    %13 = vector.load %arg4[%c0_9, %c0_10] : memref<1x128xf32, #tpu.memory_space<vmem>>, vector<1x128xf32>
    %14 = vector.broadcast %13 : vector<1x128xf32> to vector<16x128xf32>
    %15 = arith.addf %12, %14 : vector<16x128xf32>
    %16 = arith.mulf %15, %10 : vector<16x128xf32>
    %c0_11 = arith.constant 0 : index
    %c0_12 = arith.constant 0 : index
    %17 = vector.load %arg6[%c0_11, %c0_12] : memref<16x128xf32, #tpu.memory_space<vmem>>, vector<16x128xf32>
    tpu.vector_store %arg6[%c0_11, %c0_12], %16 {strides = array<i32>} : memref<16x128xf32, #tpu.memory_space<vmem>>, vector<16x128xf32>,
    return
  }
  func.func @transform_0(%arg0: i32) -> (i32, i32) {
    %c0_i32 = arith.constant 0 : i32
    %c0_i32_0 = arith.constant 0 : i32
    return %arg0, %c0_i32 : i32, i32
  }
  func.func @transform_1(%arg0: i32) -> (i32, i32) {
    %c0_i32 = arith.constant 0 : i32
    %c0_i32_0 = arith.constant 0 : i32
    %c0_i32_1 = arith.constant 0 : i32
    return %c0_i32, %c0_i32_0 : i32, i32
  }
  func.func @transform_2(%arg0: i32) -> (i32, i32) {
    %c0_i32 = arith.constant 0 : i32
    %c0_i32_0 = arith.constant 0 : i32
    %c0_i32_1 = arith.constant 0 : i32
    return %c0_i32, %c0_i32_0 : i32, i32
  }
  func.func @transform_3(%arg0: i32) -> (i32, i32) {
    %c0_i32 = arith.constant 0 : i32
    %c0_i32_0 = arith.constant 0 : i32
    %c0_i32_1 = arith.constant 0 : i32
    return %c0_i32, %c0_i32_0 : i32, i32
  }
  func.func @transform_4(%arg0: i32) -> (i32, i32) {
    %c0_i32 = arith.constant 0 : i32
    %c0_i32_0 = arith.constant 0 : i32
    %c0_i32_1 = arith.constant 0 : i32
    return %c0_i32, %c0_i32_0 : i32, i32
  }
  func.func @transform_5(%arg0: i32) -> (i32, i32) {
    %c0_i32 = arith.constant 0 : i32
    %c0_i32_0 = arith.constant 0 : i32
    return %arg0, %c0_i32 : i32, i32
  }
}

</mosaic_0001>

<llo_original>
// kernel: tpu_custom_call.1
$region0: #{tpu_custom_call.1}
  #allocation0 [shape = 'u32[]', space=smem, size = 0x4, offset = 0x4, fixed_abs, tag = 'smem constant byte address 0x4 - core index']
  #allocation1 [shape = 'u32[144,128]{1,0:T(1,128)}', space=vmem, size = 0x12000, scoped, tag = 'internal scratch']
  %s0 = inlined_call_operand.hbm [shape: bf16[32,128], index: 0, kind: input, shape index: {}]
  %s1 = inlined_call_operand.hbm [shape: bf16[128,128], index: 1, kind: input, shape index: {}]
  %s2 = inlined_call_operand.hbm [shape: bf16[128,128], index: 2, kind: input, shape index: {}]
  %s3 = inlined_call_operand.vmem [shape: f32[1,128], index: 3, kind: input, shape index: {}]
  %s4 = inlined_call_operand.vmem [shape: f32[1,128], index: 4, kind: input, shape index: {}]
  %s5 = inlined_call_operand.hbm [shape: f32[32,128], index: 5, kind: output, shape index: {}]
  %s6 = sld [smem:[#allocation0]]
  $region65: #{tpu_custom_call.1} parent=0
    _
  %s8 = ssub.s32 1, %s6
  %s9 = scalar_select 0, %s8, %s6
  $region1: #{tpu_custom_call.1} parent=0
    #allocation2 [shape = 'u8[8192]{0}', space=vmem, size = 0x2000, scoped, tag = 'input window, operand 0']
    #allocation3 [shape = 's32[2]{0}', space=sflag, size = 0x8, scoped, tag = 'scoped memory for tpu_custom_call.1']
    #allocation4 [shape = 's32[2]{0}', space=sflag, size = 0x8, scoped, tag = 'scoped memory for tpu_custom_call.1']
    #allocation5 [shape = 'u8[32768]{0}', space=vmem, size = 0x8000, scoped, tag = 'input window, operand 1, single buffered']
    #allocation6 [shape = 's32[1]{0}', space=sflag, size = 0x4, scoped, tag = 'scoped memory for tpu_custom_call.1']
    #allocation7 [shape = 'u8[32768]{0}', space=vmem, size = 0x8000, scoped, tag = 'input window, operand 2, single buffered']
    #allocation8 [shape = 'u8[16384]{0}', space=vmem, size = 0x4000, scoped, tag = 'output window, operand 0']
    %10 = vsyncpa [#allocation3], 0
    %s11 = scalar_lea.sflag [#allocation3], 1
    %12 = vsyncpa %s11, 0
    %13 = vsyncpa [#allocation6], 0
    %14 = vsyncpa [#allocation4], 0
    %s15 = scalar_lea.sflag [#allocation4], 1
    %16 = vsyncpa %s15, 0
    loop: start=0, step=1, limit=4
    $region2: #{tpu_custom_call.1} parent=1 // loop_pre_header
      _
    $region3: #{tpu_custom_call.1} parent=1 // loop_header
      %s18 = sphi 0, %s22
      %p19 = scmp.ge.s32.totalorder %s18, 4
      %s28 = sphi 0, %s30
      %s31 = sphi 0, %s28
      %s32 = sphi 0, %s31
      %s48 = sphi 0, %s32
      %s52 = sphi 0, %s52
      %s54 = sphi 0, %s52
      %s55 = sphi 0, %s54
      %s69 = sphi 0, %s55
      %s73 = sphi 0, %s73
      %s75 = sphi 0, %s73
      %s76 = sphi 0, %s75
      %s90 = sphi 0, %s76
      %s94 = sphi 0, %s94
      %s96 = sphi 0, %s94
      %s97 = sphi 0, %s96
      %s111 = sphi 0, %s97
      %s115 = sphi 0, %s115
      %s117 = sphi 0, %s115
      %s118 = sphi 0, %s117
      %s132 = sphi 0, %s118
      %s138 = sphi 0, %s140
      %s141 = sphi 0, %s138
      %s142 = sphi 0, %s141
      %s158 = sphi 0, %s142
    $region4: #{tpu_custom_call.1} parent=1 // loop_header_branch
      %21 = sbr.rel (%p19) target = $region8
    $region5: #{tpu_custom_call.1} parent=1 // loop_body
      %s23 = ssub.s32 %s18, 1
      %s24 = ssub.s32 %s18, 2
      %s25 = sadd.s32 %s18, 1
      %s26 = ssub.s32 %s18, %s25
      %p27 = scmp.eq.s32.totalorder %s26, 0
      %s29 = sadd.s32 %s28, 1
      %s30 = scalar_select %p27, %s28, %s29
      %p33 = pneg %p27
      %p34 = scmp.eq.s32.totalorder %s18, 1
      %p35 = por %p33, %p34
      %p36 = scmp.ne.s32.totalorder %s28, %s31
      %p37 = scmp.eq.s32.totalorder %s18, 0
      %p38 = por %p36, %p37
      %p39 = scmp.ne.s32.totalorder %s28, %s31
      %p40 = scmp.eq.s32.totalorder %s23, 1
      %p41 = por %p39, %p40
      %p42 = scmp.ne.s32.totalorder %s31, %s32
      %p43 = scmp.eq.s32.totalorder %s23, 0
      %p44 = por %p42, %p43
      %p45 = scmp.ne.s32.totalorder %s31, %s32
      %p46 = scmp.eq.s32.totalorder %s24, 1
      %p47 = por %p45, %p46
      %p49 = scmp.ne.s32.totalorder %s32, %s48
      %p50 = scmp.eq.s32.totalorder %s24, 0
      %p51 = por %p49, %p50
      %s53 = sadd.s32 %s52, 1
      %p56 = scmp.eq.s32.totalorder %s18, 1
      %p57 = scmp.ne.s32.totalorder %s52, %s54
      %p58 = scmp.eq.s32.totalorder %s18, 0
      %p59 = por %p57, %p58
      %p60 = scmp.ne.s32.totalorder %s52, %s54
      %p61 = scmp.eq.s32.totalorder %s23, 1
      %p62 = por %p60, %p61
      %p63 = scmp.ne.s32.totalorder %s54, %s55
      %p64 = scmp.eq.s32.totalorder %s23, 0
      %p65 = por %p63, %p64
      %p66 = scmp.ne.s32.totalorder %s54, %s55
      %p67 = scmp.eq.s32.totalorder %s24, 1
      %p68 = por %p66, %p67
      %p70 = scmp.ne.s32.totalorder %s55, %s69
      %p71 = scmp.eq.s32.totalorder %s24, 0
      %p72 = por %p70, %p71
      %s74 = sadd.s32 %s73, 1
      %p77 = scmp.eq.s32.totalorder %s18, 1
      %p78 = scmp.ne.s32.totalorder %s73, %s75
      %p79 = scmp.eq.s32.totalorder %s18, 0
      %p80 = por %p78, %p79
      %p81 = scmp.ne.s32.totalorder %s73, %s75
      %p82 = scmp.eq.s32.totalorder %s23, 1
      %p83 = por %p81, %p82
      %p84 = scmp.ne.s32.totalorder %s75, %s76
      %p85 = scmp.eq.s32.totalorder %s23, 0
      %p86 = por %p84, %p85
      %p87 = scmp.ne.s32.totalorder %s75, %s76
      %p88 = scmp.eq.s32.totalorder %s24, 1
      %p89 = por %p87, %p88
      %p91 = scmp.ne.s32.totalorder %s76, %s90
      %p92 = scmp.eq.s32.totalorder %s24, 0
      %p93 = por %p91, %p92
      %s95 = sadd.s32 %s94, 1
      %p98 = scmp.eq.s32.totalorder %s18, 1
      %p99 = scmp.ne.s32.totalorder %s94, %s96
      %p100 = scmp.eq.s32.totalorder %s18, 0
      %p101 = por %p99, %p100
      %p102 = scmp.ne.s32.totalorder %s94, %s96
      %p103 = scmp.eq.s32.totalorder %s23, 1
      %p104 = por %p102, %p103
      %p105 = scmp.ne.s32.totalorder %s96, %s97
      %p106 = scmp.eq.s32.totalorder %s23, 0
      %p107 = por %p105, %p106
      %p108 = scmp.ne.s32.totalorder %s96, %s97
      %p109 = scmp.eq.s32.totalorder %s24, 1
      %p110 = por %p108, %p109
      %p112 = scmp.ne.s32.totalorder %s97, %s111
      %p113 = scmp.eq.s32.totalorder %s24, 0
      %p114 = por %p112, %p113
      %s116 = sadd.s32 %s115, 1
      %p119 = scmp.eq.s32.totalorder %s18, 1
      %p120 = scmp.ne.s32.totalorder %s115, %s117
      %p121 = scmp.eq.s32.totalorder %s18, 0
      %p122 = por %p120, %p121
      %p123 = scmp.ne.s32.totalorder %s115, %s117
      %p124 = scmp.eq.s32.totalorder %s23, 1
      %p125 = por %p123, %p124
      %p126 = scmp.ne.s32.totalorder %s117, %s118
      %p127 = scmp.eq.s32.totalorder %s23, 0
      %p128 = por %p126, %p127
      %p129 = scmp.ne.s32.totalorder %s117, %s118
      %p130 = scmp.eq.s32.totalorder %s24, 1
      %p131 = por %p129, %p130
      %p133 = scmp.ne.s32.totalorder %s118, %s132
      %p134 = scmp.eq.s32.totalorder %s24, 0
      %p135 = por %p133, %p134
      %s136 = ssub.s32 %s18, %s25
      %p137 = scmp.eq.s32.totalorder %s136, 0
      %s139 = sadd.s32 %s138, 1
      %s140 = scalar_select %p137, %s138, %s139
      %p143 = pneg %p137
      %p144 = scmp.eq.s32.totalorder %s18, 1
      %p145 = por %p143, %p144
      %p146 = scmp.ne.s32.totalorder %s138, %s141
      %p147 = scmp.eq.s32.totalorder %s18, 0
      %p148 = por %p146, %p147
      %p149 = scmp.ne.s32.totalorder %s138, %s141
      %p150 = scmp.eq.s32.totalorder %s23, 1
      %p151 = por %p149, %p150
      %p152 = scmp.ne.s32.totalorder %s141, %s142
      %p153 = scmp.eq.s32.totalorder %s23, 0
      %p154 = por %p152, %p153
      %p155 = scmp.ne.s32.totalorder %s141, %s142
      %p156 = scmp.eq.s32.totalorder %s24, 1
      %p157 = por %p155, %p156
      %p159 = scmp.ne.s32.totalorder %s142, %s158
      %p160 = scmp.eq.s32.totalorder %s24, 0
      %p161 = por %p159, %p160
      %p162 = scmp.le.s32.totalorder 1, %s18
      %p163 = scmp.lt.s32.totalorder %s18, 3
      %p164 = pnand %p162, %p163
      %p165 = pneg %p164
      // Predicated region
      $region9: #{tpu_custom_call.1} parent=5 // pred_check
        _
      $region10: #{tpu_custom_call.1} parent=5 // pred_check_branch
        %167 = sbr.rel (%p164) target = $region12
      $region11: #{tpu_custom_call.1} parent=5 // pred_region
        %s168 = ssub.s32 %s18, 1
        // Predicated region
        $region13: #{tpu_custom_call.1} parent=11 // pred_check
          %p169 = pneg %p65
        $region14: #{tpu_custom_call.1} parent=11 // pred_check_branch
          %171 = sbr.rel (%p169) target = $region16
        $region15: #{tpu_custom_call.1} parent=11 // pred_region
          %s173 = ssub.s32 1024, 1024
          %174 = vsyncadd [#allocation6], %s173
          %s175 = sshll.u32 [#allocation5], 4
          %s176 = int_to_ptr.vmem [resolvable:$true] %s175
          %181 = dma.hbm_to_vmem [thread:$0]  %s1, 1024, %s176, [#allocation6], 64, 64, 4
        $region16: #{tpu_custom_call.1} parent=11 // pred_fallthru
          _
        // Predicated region
        $region17: #{tpu_custom_call.1} parent=11 // pred_check
          %p182 = pneg %p86
        $region18: #{tpu_custom_call.1} parent=11 // pred_check_branch
          %184 = sbr.rel (%p182) target = $region20
        $region19: #{tpu_custom_call.1} parent=11 // pred_region
          %s186 = ssub.s32 1024, 1024
          %187 = vsyncadd [#allocation6], %s186
          %s188 = sshll.u32 [#allocation7], 4
          %s189 = int_to_ptr.vmem [resolvable:$true] %s188
          %194 = dma.hbm_to_vmem [thread:$0]  %s2, 1024, %s189, [#allocation6], 64, 64, 4
        $region20: #{tpu_custom_call.1} parent=11 // pred_fallthru
          _
        // Predicated region
        $region21: #{tpu_custom_call.1} parent=11 // pred_check
          %p195 = pneg %p107
        $region22: #{tpu_custom_call.1} parent=11 // pred_check_branch
          %197 = sbr.rel (%p195) target = $region24
        $region23: #{tpu_custom_call.1} parent=11 // pred_region
          _
        $region24: #{tpu_custom_call.1} parent=11 // pred_fallthru
          _
        // Predicated region
        $region25: #{tpu_custom_call.1} parent=11 // pred_check
          %p198 = pneg %p128
        $region26: #{tpu_custom_call.1} parent=11 // pred_check_branch
          %200 = sbr.rel (%p198) target = $region28
        $region27: #{tpu_custom_call.1} parent=11 // pred_region
          _
        $region28: #{tpu_custom_call.1} parent=11 // pred_fallthru
          _
      $region12: #{tpu_custom_call.1} parent=5 // pred_fallthru
        _
      %p201 = scmp.lt.s32.totalorder %s18, 2
      // Predicated region
      $region29: #{tpu_custom_call.1} parent=5 // pred_check
        %p202 = pneg %p201
      $region30: #{tpu_custom_call.1} parent=5 // pred_check_branch
        %204 = sbr.rel (%p202) target = $region32
      $region31: #{tpu_custom_call.1} parent=5 // pred_region
        // Predicated region
        $region33: #{tpu_custom_call.1} parent=31 // pred_check
          %p205 = pneg %p38
        $region34: #{tpu_custom_call.1} parent=31 // pred_check_branch
          %207 = sbr.rel (%p205) target = $region36
        $region35: #{tpu_custom_call.1} parent=31 // pred_region
          %s208 = sand.u32 %s28, 1
          %s209 = scalar_lea.sflag [#allocation3], %s208
          %s210 = sand.u32 %s28, 1
          %s211 = smul.addr %s210, 8
          %s212 = scalar_lea.vmem [#allocation2], %s211
          %s213 = smul.u32 2, %s18
          %s215 = ssub.s32 128, 128
          %216 = vsyncadd %s209, %s215
          %s217 = smul.addr %s213, 64
          %s218 = scalar_lea.hbm %s0, %s217
          %s219 = sshll.u32 %s212, 4
          %s220 = int_to_ptr.vmem [resolvable:$true] %s219
          %225 = dma.hbm_to_vmem [thread:$0]  %s218, 128, %s220, %s209, 64, 64, 4
        $region36: #{tpu_custom_call.1} parent=31 // pred_fallthru
          _
      $region32: #{tpu_custom_call.1} parent=5 // pred_fallthru
        _
      %p226 = scmp.le.s32.totalorder 1, %s18
      %p227 = scmp.lt.s32.totalorder %s18, 3
      %p228 = pnand %p226, %p227
      %p229 = pneg %p228
      // Predicated region
      $region37: #{tpu_custom_call.1} parent=5 // pred_check
        _
      $region38: #{tpu_custom_call.1} parent=5 // pred_check_branch
        %231 = sbr.rel (%p228) target = $region40
      $region39: #{tpu_custom_call.1} parent=5 // pred_region
        %s232 = ssub.s32 %s18, 1
        %s233 = sand.u32 %s31, 1
        %s234 = scalar_lea.sflag [#allocation3], %s233
        %s235 = sand.u32 %s31, 1
        %s236 = smul.addr %s235, 8
        %s237 = scalar_lea.vmem [#allocation2], %s236
        // Predicated region
        $region41: #{tpu_custom_call.1} parent=39 // pred_check
          %p238 = pneg %p44
        $region42: #{tpu_custom_call.1} parent=39 // pred_check_branch
          %240 = sbr.rel (%p238) target = $region44
        $region43: #{tpu_custom_call.1} parent=39 // pred_region
          %241 = dma.done %s234, 128
        $region44: #{tpu_custom_call.1} parent=39 // pred_fallthru
          _
        // Predicated region
        $region45: #{tpu_custom_call.1} parent=39 // pred_check
          %p242 = pneg %p65
        $region46: #{tpu_custom_call.1} parent=39 // pred_check_branch
          %244 = sbr.rel (%p242) target = $region48
        $region47: #{tpu_custom_call.1} parent=39 // pred_region
          %245 = dma.done [#allocation6], 1024
        $region48: #{tpu_custom_call.1} parent=39 // pred_fallthru
          _
        // Predicated region
        $region49: #{tpu_custom_call.1} parent=39 // pred_check
          %p246 = pneg %p86
        $region50: #{tpu_custom_call.1} parent=39 // pred_check_branch
          %248 = sbr.rel (%p246) target = $region52
        $region51: #{tpu_custom_call.1} parent=39 // pred_region
          %249 = dma.done [#allocation6], 1024
        $region52: #{tpu_custom_call.1} parent=39 // pred_fallthru
          _
        %s250 = sand.u32 %s31, 1
        %s251 = scalar_lea.sflag [#allocation3], %s250
        %s252 = sand.u32 %s31, 1
        %s253 = smul.addr %s252, 8
        %s254 = scalar_lea.vmem [#allocation2], %s253
        %p255 = pneg %p44
        %p256 = pneg %p41
        %p257 = pneg %p65
        %p258 = pneg %p62
        %p259 = pneg %p86
        %p260 = pneg %p83
        %p261 = pneg %p107
        %p262 = pneg %p104
        %p263 = pneg %p128
        %p264 = pneg %p125
        %p265 = pneg %p154
        %p266 = pneg %p151
        %s267 = sand.u32 %s141, 1
        %s268 = scalar_lea.sflag [#allocation4], %s267
        %s269 = sand.u32 %s141, 1
        %s270 = smul.addr %s269, 16
        %s271 = scalar_lea.vmem [#allocation8], %s270
        %s272 = smul.u32 2, %s23
        %s273 = smul.u32 2, %s23
        %v275 = vld [vmem:[%s237] sm:$0xf]
        %v276 = vld [vmem:[%s237 + $0x4] sm:$0xf]
        %v277 = vld [vmem:[#allocation7] sm:$0xf]
        %v278 = vld [vmem:[#allocation7 + $0x4] sm:$0xf]
        %v279 = vld [vmem:[#allocation7 + $0x8] sm:$0xf]
        %v280 = vld [vmem:[#allocation7 + $0xc] sm:$0xf]
        %v281 = vld [vmem:[#allocation7 + $0x10] sm:$0xf]
        %v282 = vld [vmem:[#allocation7 + $0x14] sm:$0xf]
        %v283 = vld [vmem:[#allocation7 + $0x18] sm:$0xf]
        %v284 = vld [vmem:[#allocation7 + $0x1c] sm:$0xf]
        %v285 = vld [vmem:[#allocation7 + $0x20] sm:$0xf]
        %v286 = vld [vmem:[#allocation7 + $0x24] sm:$0xf]
        %v287 = vld [vmem:[#allocation7 + $0x28] sm:$0xf]
        %v288 = vld [vmem:[#allocation7 + $0x2c] sm:$0xf]
        %v289 = vld [vmem:[#allocation7 + $0x30] sm:$0xf]
        %v290 = vld [vmem:[#allocation7 + $0x34] sm:$0xf]
        %v291 = vld [vmem:[#allocation7 + $0x38] sm:$0xf]
        %v292 = vld [vmem:[#allocation7 + $0x3c] sm:$0xf]
        %v293 = vld [vmem:[%s4] sm:$0x1]
        %v295 = vlaneseq
        %v296 = vshrl.u32 %v295, 7
        %v297 = vsub.s32 0, %v296
        %v298 = vrot.slane %v293, %v297
        %v302 = vunpack.c.l.b16 %v275
        %v303 = vunpack.c.l.b16 %v276
        %v304 = vpack.c.b16 %v303, %v302
        %v322 = vunpack.c.l.b16 %v277
        %v323 = vunpack.c.l.b16 %v278
        %v324 = vunpack.c.l.b16 %v279
        %v325 = vunpack.c.l.b16 %v280
        %v326 = vunpack.c.l.b16 %v281
        %v327 = vunpack.c.l.b16 %v282
        %v328 = vunpack.c.l.b16 %v283
        %v329 = vunpack.c.l.b16 %v284
        %v330 = vunpack.c.l.b16 %v285
        %v331 = vunpack.c.l.b16 %v286
        %v332 = vunpack.c.l.b16 %v287
        %v333 = vunpack.c.l.b16 %v288
        %v334 = vunpack.c.l.b16 %v289
        %v335 = vunpack.c.l.b16 %v290
        %v336 = vunpack.c.l.b16 %v291
        %v337 = vunpack.c.l.b16 %v292
        %v338 = vpack.c.b16 %v323, %v322
        %v339 = vpack.c.b16 %v325, %v324
        %v340 = vpack.c.b16 %v327, %v326
        %v341 = vpack.c.b16 %v329, %v328
        %v342 = vpack.c.b16 %v331, %v330
        %v343 = vpack.c.b16 %v333, %v332
        %v344 = vpack.c.b16 %v335, %v334
        %v345 = vpack.c.b16 %v337, %v336
        %354 = vmatprep.subr.bf16.mxu0 0
        %355 = vmatpush1.bf16.msra.mxu0 %v338
        %356 = vmatprep.subr.bf16.mxu0 0
        %357 = vmatpush1.bf16.msra.mxu0 %v339
        %358 = vmatprep.subr.bf16.mxu0 0
        %359 = vmatpush1.bf16.msra.mxu0 %v340
        %360 = vmatprep.subr.bf16.mxu0 0
        %361 = vmatpush1.bf16.msra.mxu0 %v341
        %362 = vmatprep.subr.bf16.mxu0 0
        %363 = vmatpush1.bf16.msra.mxu0 %v342
        %364 = vmatprep.subr.bf16.mxu0 0
        %365 = vmatpush1.bf16.msra.mxu0 %v343
        %366 = vmatprep.subr.bf16.mxu0 0
        %367 = vmatpush1.bf16.msra.mxu0 %v344
        %368 = vmatprep.subr.bf16.mxu0 0
        %369 = vmatpush1.bf16.msra.mxu0 %v345
        %370 = vmatprep.subr.bf16.mxu0 0
        %371 = vmatpush1.bf16.msra.mxu0 0
        %372 = vmatprep.subr.bf16.mxu0 0
        %373 = vmatpush1.bf16.msra.mxu0 0
        %374 = vmatprep.subr.bf16.mxu0 0
        %375 = vmatpush1.bf16.msra.mxu0 0
        %376 = vmatprep.subr.bf16.mxu0 0
        %377 = vmatpush1.bf16.msra.mxu0 0
        %378 = vmatprep.subr.bf16.mxu0 0
        %379 = vmatpush1.bf16.msra.mxu0 0
        %380 = vmatprep.subr.bf16.mxu0 0
        %381 = vmatpush1.bf16.msra.mxu0 0
        %382 = vmatprep.subr.bf16.mxu0 0
        %383 = vmatpush1.bf16.msra.mxu0 0
        %384 = vmatprep.subr.bf16.mxu0 0
        %385 = vmatpush1.bf16.msra.mxu0 0
        %386 = vmatprep.mubr.bf16.mxu0 0
        %387 = vmatmul.mubr.bf16.gmra.mrb[0].mxu0 %v304
        %v388 = vpop.f32.mrb[0].mxu0
        %v389 = vadd.f32 %v298, %v388
        %v390 = vpop.f32.mrb[0].mxu0
        %v391 = vpop.f32.mrb[0].mxu0
        %v392 = vadd.f32 %v298, %v391
        %v393 = vpop.f32.mrb[0].mxu0
        %394 = vdwg.mxu0
        %v395 = vxor.u32 %v389, 2147483648
        %v396 = vxor.u32 %v392, 2147483648
        %v397 = vmul.f32 %v395, 1.442695
        %v398 = vpow.pop %v397
        %v399 = vmul.f32 %v396, 1.442695
        %v400 = vpow.pop %v399
        %v401 = vadd.f32 %v398, 1.0
        %v402 = vadd.f32 %v400, 1.0
        %v403 = vrcp.pop %v401
        %v404 = vmul.f32 1.0, %v403
        %v405 = vrcp.pop %v402
        %v406 = vmul.f32 1.0, %v405
        %v407 = vld [vmem:[#allocation5] sm:$0xf]
        %v408 = vld [vmem:[#allocation5 + $0x4] sm:$0xf]
        %v409 = vld [vmem:[#allocation5 + $0x8] sm:$0xf]
        %v410 = vld [vmem:[#allocation5 + $0xc] sm:$0xf]
        %v411 = vld [vmem:[#allocation5 + $0x10] sm:$0xf]
        %v412 = vld [vmem:[#allocation5 + $0x14] sm:$0xf]
        %v413 = vld [vmem:[#allocation5 + $0x18] sm:$0xf]
        %v414 = vld [vmem:[#allocation5 + $0x1c] sm:$0xf]
        %v415 = vld [vmem:[#allocation5 + $0x20] sm:$0xf]
        %v416 = vld [vmem:[#allocation5 + $0x24] sm:$0xf]
        %v417 = vld [vmem:[#allocation5 + $0x28] sm:$0xf]
        %v418 = vld [vmem:[#allocation5 + $0x2c] sm:$0xf]
        %v419 = vld [vmem:[#allocation5 + $0x30] sm:$0xf]
        %v420 = vld [vmem:[#allocation5 + $0x34] sm:$0xf]
        %v421 = vld [vmem:[#allocation5 + $0x38] sm:$0xf]
        %v422 = vld [vmem:[#allocation5 + $0x3c] sm:$0xf]
        %v423 = vld [vmem:[%s3] sm:$0x1]
        %v425 = vlaneseq
        %v426 = vshrl.u32 %v425, 7
        %v427 = vsub.s32 0, %v426
        %v428 = vrot.slane %v423, %v427
        %v446 = vunpack.c.l.b16 %v407
        %v447 = vunpack.c.l.b16 %v408
        %v448 = vunpack.c.l.b16 %v409
        %v449 = vunpack.c.l.b16 %v410
        %v450 = vunpack.c.l.b16 %v411
        %v451 = vunpack.c.l.b16 %v412
        %v452 = vunpack.c.l.b16 %v413
        %v453 = vunpack.c.l.b16 %v414
        %v454 = vunpack.c.l.b16 %v415
        %v455 = vunpack.c.l.b16 %v416
        %v456 = vunpack.c.l.b16 %v417
        %v457 = vunpack.c.l.b16 %v418
        %v458 = vunpack.c.l.b16 %v419
        %v459 = vunpack.c.l.b16 %v420
        %v460 = vunpack.c.l.b16 %v421
        %v461 = vunpack.c.l.b16 %v422
        %v462 = vpack.c.b16 %v447, %v446
        %v463 = vpack.c.b16 %v449, %v448
        %v464 = vpack.c.b16 %v451, %v450
        %v465 = vpack.c.b16 %v453, %v452
        %v466 = vpack.c.b16 %v455, %v454
        %v467 = vpack.c.b16 %v457, %v456
        %v468 = vpack.c.b16 %v459, %v458
        %v469 = vpack.c.b16 %v461, %v460
        %478 = vmatprep.subr.bf16.mxu0 0
        %479 = vmatpush1.bf16.msra.mxu0 %v462
        %480 = vmatprep.subr.bf16.mxu0 0
        %481 = vmatpush1.bf16.msra.mxu0 %v463
        %482 = vmatprep.subr.bf16.mxu0 0
        %483 = vmatpush1.bf16.msra.mxu0 %v464
        %484 = vmatprep.subr.bf16.mxu0 0
        %485 = vmatpush1.bf16.msra.mxu0 %v465
        %486 = vmatprep.subr.bf16.mxu0 0
        %487 = vmatpush1.bf16.msra.mxu0 %v466
        %488 = vmatprep.subr.bf16.mxu0 0
        %489 = vmatpush1.bf16.msra.mxu0 %v467
        %490 = vmatprep.subr.bf16.mxu0 0
        %491 = vmatpush1.bf16.msra.mxu0 %v468
        %492 = vmatprep.subr.bf16.mxu0 0
        %493 = vmatpush1.bf16.msra.mxu0 %v469
        %494 = vmatprep.subr.bf16.mxu0 0
        %495 = vmatpush1.bf16.msra.mxu0 0
        %496 = vmatprep.subr.bf16.mxu0 0
        %497 = vmatpush1.bf16.msra.mxu0 0
        %498 = vmatprep.subr.bf16.mxu0 0
        %499 = vmatpush1.bf16.msra.mxu0 0
        %500 = vmatprep.subr.bf16.mxu0 0
        %501 = vmatpush1.bf16.msra.mxu0 0
        %502 = vmatprep.subr.bf16.mxu0 0
        %503 = vmatpush1.bf16.msra.mxu0 0
        %504 = vmatprep.subr.bf16.mxu0 0
        %505 = vmatpush1.bf16.msra.mxu0 0
        %506 = vmatprep.subr.bf16.mxu0 0
        %507 = vmatpush1.bf16.msra.mxu0 0
        %508 = vmatprep.subr.bf16.mxu0 0
        %509 = vmatpush1.bf16.msra.mxu0 0
        %510 = vmatprep.mubr.bf16.mxu0 0
        %511 = vmatmul.mubr.bf16.gmra.mrb[0].mxu0 %v304
        %v512 = vpop.f32.mrb[0].mxu0
        %v513 = vadd.f32 %v428, %v512
        %v514 = vpop.f32.mrb[0].mxu0
        %v515 = vpop.f32.mrb[0].mxu0
        %v516 = vadd.f32 %v428, %v515
        %v517 = vpop.f32.mrb[0].mxu0
        %518 = vdwg.mxu0
        %v519 = vmul.f32 %v513, %v404
        %v520 = vmul.f32 %v516, %v406
        %521 = vst [vmem:[%s271] sm:$0xff] %v519
        %522 = vst [vmem:[%s271 + $0x8] sm:$0xff] %v520
        %s523 = sand.u32 %s141, 1
        %s524 = scalar_lea.sflag [#allocation4], %s523
        %s525 = sand.u32 %s141, 1
        %s526 = smul.addr %s525, 16
        %s527 = scalar_lea.vmem [#allocation8], %s526
        // Predicated region
        $region53: #{tpu_custom_call.1} parent=39 // pred_check
          %p528 = pneg %p151
        $region54: #{tpu_custom_call.1} parent=39 // pred_check_branch
          %530 = sbr.rel (%p528) target = $region56
        $region55: #{tpu_custom_call.1} parent=39 // pred_region
          %s531 = smul.u32 2, %s23
          %s533 = ssub.s32 256, 256
          %534 = vsyncadd %s524, %s533
          %s535 = smul.addr %s531, 128
          %s536 = scalar_lea.hbm %s5, %s535
          %s537 = sshll.u32 %s527, 4
          %s538 = int_to_ptr.vmem [resolvable:$true] %s537
          %543 = dma.vmem_to_hbm [thread:$0]  %s538, 256, %s536, %s524, 128, 128, 8
        $region56: #{tpu_custom_call.1} parent=39 // pred_fallthru
          _
      $region40: #{tpu_custom_call.1} parent=5 // pred_fallthru
        _
      %p544 = scmp.le.s32.totalorder 2, %s18
      // Predicated region
      $region57: #{tpu_custom_call.1} parent=5 // pred_check
        %p545 = pneg %p544
      $region58: #{tpu_custom_call.1} parent=5 // pred_check_branch
        %547 = sbr.rel (%p545) target = $region60
      $region59: #{tpu_custom_call.1} parent=5 // pred_region
        %s548 = ssub.s32 %s18, 2
        // Predicated region
        $region61: #{tpu_custom_call.1} parent=59 // pred_check
          %p549 = pneg %p157
        $region62: #{tpu_custom_call.1} parent=59 // pred_check_branch
          %551 = sbr.rel (%p549) target = $region64
        $region63: #{tpu_custom_call.1} parent=59 // pred_region
          %s552 = sand.u32 %s142, 1
          %s553 = scalar_lea.sflag [#allocation4], %s552
          %s554 = sand.u32 %s142, 1
          %s555 = smul.addr %s554, 16
          %s556 = scalar_lea.vmem [#allocation8], %s555
          %557 = dma.done %s553, 256
        $region64: #{tpu_custom_call.1} parent=59 // pred_fallthru
          _
      $region60: #{tpu_custom_call.1} parent=5 // pred_fallthru
        _
    $region6: #{tpu_custom_call.1} parent=1 // loop_footer
      %s22 = sadd.s32 1, %s18
    $region7: #{tpu_custom_call.1} parent=1 // loop_footer_branch
      %17 = sbr.rel target = $region3
    $region8: #{tpu_custom_call.1} parent=1 // loop_exit
      _
    %558 = vsyncpa [#allocation3], 1
    %s559 = scalar_lea.sflag [#allocation3], 1
    %560 = vsyncpa %s559, 1
    %561 = vsyncpa [#allocation6], 1
    %562 = vsyncpa [#allocation4], 1
    %s563 = scalar_lea.sflag [#allocation4], 1
    %564 = vsyncpa %s563, 1

</llo_original>
